<compile_context>
chip_gen: v7x
topology: tpu7x:2x2x1
jax: 0.10.0
libtpu: 0.0.40
codegen_flags: <defaults>
</compile_context>

<pallas_src>
import jax
import jax.numpy as jnp
from jax import lax
from jax.experimental import pallas as pl
from jax.experimental.pallas import tpu as pltpu

BN_EPS = 1e-5
LANE = 128
SUBLANE = 8


def _round_up(n, m):
    return ((n + m - 1) // m) * m


def _pad_last(a, target):
    pad = target - a.shape[-1]
    if pad == 0:
        return a
    return jnp.pad(a, [(0, 0)] * (a.ndim - 1) + [(0, pad)])


def _pad_axis0(a, target):
    pad = target - a.shape[0]
    if pad == 0:
        return a
    return jnp.pad(a, [(0, pad)] + [(0, 0)] * (a.ndim - 1))


def _vmem_info():
    """(physical_vmem_bytes, usable_budget_bytes) for the current chip generation."""
    try:
        cap = int(pltpu.get_tpu_info().vmem_capacity_bytes)
    except Exception:  # conservative fallback: v7x-sized physical VMEM
        cap = 64 << 20
    budget = max(int(cap * 0.75), 32 << 20)  # leave headroom for compiler scratch
    return cap, budget


# ----------------------------------------------------------------------------- kernels


def _stage_compute(x, w, bgb):
    """BatchNorm1d(tanh(x @ w + b)) in training mode (batch stats, biased variance)."""
    if x.dtype != w.dtype:                     # bf16 weight path: match MXU input dtypes
        x = x.astype(w.dtype)
    h = jnp.dot(x, w, preferred_element_type=jnp.float32)   # MXU, f32 accumulate
    h = jnp.tanh(h + bgb[0:1, :])                            # EUP
    # Centered two-pass batch statistics: cheap on a VMEM-resident tile and numerically
    # safer than the one-pass E[h^2]-mean^2 formulation for near-constant columns.
    mean = jnp.mean(h, axis=0, keepdims=True)
    c = h - mean
    var = jnp.mean(c * c, axis=0, keepdims=True)
    y = c * lax.rsqrt(var + BN_EPS)
    return y * bgb[1:2, :] + bgb[2:3, :]
    # NOTE: self.drop (Dropout) is declared in __init__ but never used in forward -> not applied.


def _stage_kernel(x_ref, w_ref, bgb_ref, out_ref):
    out_ref[...] = _stage_compute(x_ref[...], w_ref[...], bgb_ref[...]).astype(out_ref.dtype)


def _fused_kernel(x_ref, we_ref, bgbe_ref, wd_ref, bgbd_ref, out_ref, code_ref):
    code = _stage_compute(x_ref[...], we_ref[...], bgbe_ref[...])
    code_ref[...] = code.astype(code_ref.dtype)
    out_ref[...] = _stage_compute(code, wd_ref[...], bgbd_ref[...]).astype(out_ref.dtype)


# ----------------------------------------------------------------------------- tiled stage


def _stage_vmem_bytes(N, Din, tn, xbytes, wbytes, x_buffers):
    """VMEM bytes for one stage, modelling Pallas buffering + (8,128) layout padding."""
    n_pad = _round_up(max(N, 1), SUBLANE)
    din_lane = _round_up(Din, LANE)
    din_sub = _round_up(Din, SUBLANE)
    return (
        x_buffers * n_pad * din_lane * xbytes   # resident LHS
        + 2 * din_sub * tn * wbytes             # streamed weight tile (double buffered)
        + 2 * SUBLANE * tn * 4                  # packed (b, gamma, beta) tile (sublane padded)
        + 2 * n_pad * tn * 4                    # output tile (double buffered)
    )


def _linear_tanh_bn_tiled(x, w, bgb, *, tile_cap=2048):
    """One stage tiled over lane-aligned output-feature columns.

    x stays VMEM-resident (single-buffered), weight columns stream (double buffered),
    (b, gamma, beta) arrive packed as one (3, tn) block per step.
    """
    N, Din = x.shape
    Dout = w.shape[1]
    assert Dout % LANE == 0, "output feature dim must be padded to a multiple of 128"

    cap, budget = _vmem_info()
    xbytes = x.dtype.itemsize
    wbytes = w.dtype.itemsize

    # Lane-aligned divisors of Dout; keep >= 2 grid steps whenever possible so a megacore
    # part (v7x) can shard the parallel axis across both TensorCores (harmless on 1-TC parts).
    cands = [t for t in range(LANE, Dout + 1, LANE) if Dout % t == 0]
    if Dout >= 2 * LANE:
        cands = [t for t in cands if t <= Dout // 2] or [LANE]
    cands = [t for t in cands if t <= max(tile_cap, LANE)] or [min(cands)]

    tn = None
    for t in sorted(cands, reverse=True):
        if _stage_vmem_bytes(N, Din, t, xbytes, wbytes, x_buffers=1) <= budget:
            tn = t
            break
    if tn is None:
        # TODO(synk): add a batch-tile grid axis (streamed x + scratch BN-stat accumulation)
        # for the case where N*Din alone exceeds the VMEM budget.
        tn = min(cands)

    grid = (Dout // tn,)
    # Conservative limit: account as if x were double buffered too (covers the fallback path).
    need = _stage_vmem_bytes(N, Din, tn, xbytes, wbytes, x_buffers=2) + (2 << 20)
    vmem_limit = int(min(max(need, 32 << 20), int(cap * 0.9)))

    cost = pl.CostEstimate(
        flops=2 * N * Din * Dout,
        transcendentals=N * Dout,
        bytes_accessed=xbytes * N * Din + wbytes * Din * Dout + 4 * (N * Dout + 3 * Dout),
    )

    def call(single_buffer_x):
        x_kwargs = {"pipeline_mode": pl.Buffered(1)} if single_buffer_x else {}
        return pl.pallas_call(
            _stage_kernel,
            out_shape=jax.ShapeDtypeStruct((N, Dout), jnp.float32),
            grid_spec=pltpu.PrefetchScalarGridSpec(
                num_scalar_prefetch=0,
                grid=grid,
                in_specs=[
                    pl.BlockSpec((N, Din), lambda j: (0, 0), **x_kwargs),  # x: resident
                    pl.BlockSpec((Din, tn), lambda j: (0, j)),             # weight column slice
                    pl.BlockSpec((3, tn), lambda j: (0, j)),               # packed (b, g, beta)
                ],
                out_specs=pl.BlockSpec((N, tn), lambda j: (0, j)),
            ),
            compiler_params=pltpu.CompilerParams(
                dimension_semantics=("parallel",),   # feature tiles are independent
                vmem_limit_bytes=vmem_limit,
            ),
            cost_estimate=cost,
        )(x, w, bgb)

    try:
        # x's block index never changes -> one buffer is enough; frees N*Din bytes for larger tn.
        return call(single_buffer_x=True)
    except Exception:
        # Robust fallback if Buffered(1) is not supported by this jax/libtpu build.
        return call(single_buffer_x=False)


# ----------------------------------------------------------------------------- fused stage


def _fused_forward(x, we, bgbe, wd, bgbd, *, vmem_limit):
    N, Din = x.shape
    D1 = we.shape[1]
    D0 = wd.shape[1]
    cost = pl.CostEstimate(
        flops=2 * N * Din * D1 + 2 * N * D1 * D0,
        transcendentals=N * (D0 + D1),
        bytes_accessed=(x.size * x.dtype.itemsize + we.size * we.dtype.itemsize
                        + wd.size * wd.dtype.itemsize
                        + 4 * (N * D0 + N * D1 + 3 * D0 + 3 * D1)),
    )
    vmem_spec = pl.BlockSpec(memory_space=pltpu.MemorySpace.VMEM)
    out_p, code_p = pl.pallas_call(
        _fused_kernel,
        out_shape=(jax.ShapeDtypeStruct((N, D0), jnp.float32),
                   jax.ShapeDtypeStruct((N, D1), jnp.float32)),
        in_specs=[vmem_spec] * 5,
        out_specs=(vmem_spec, vmem_spec),
        compiler_params=pltpu.CompilerParams(vmem_limit_bytes=int(vmem_limit)),
        cost_estimate=cost,
    )(x, we, bgbe, wd, bgbd)
    return out_p, code_p


# ----------------------------------------------------------------------------- wrapper


def prepare_params(params, *, mxu_bf16=False):
    """Pad / pack parameters once (hoisted out of the per-call forward).

    With mxu_bf16=True the weight matrices are pre-cast to bf16 here, so the kernel streams
    half the bytes from HBM (f32 accumulation on the MXU is kept either way).
    """
    dim0, dim1 = params["w_enc"].shape
    D1 = _round_up(dim1, LANE)
    D0 = _round_up(dim0, LANE)
    wdt = jnp.bfloat16 if mxu_bf16 else jnp.float32

    w_enc = _pad_last(params["w_enc"], D1).astype(wdt)                    # [dim0, D1]
    w_dec = _pad_last(_pad_axis0(params["w_dec"], D1), D0).astype(wdt)    # [D1,   D0]
    # Pack (bias, gamma, beta) into one (3, Dout) array -> single DMA per tile. Zero padding
    # keeps padded output columns exactly 0 (tanh(0)=0, gamma_pad=0, beta_pad=0).
    bgb_enc = jnp.concatenate(
        [_pad_last(params["b_enc"], D1),
         _pad_last(params["g_enc"], D1),
         _pad_last(params["beta_enc"], D1)], axis=0).astype(jnp.float32)
    bgb_dec = jnp.concatenate(
        [_pad_last(params["b_dec"], D0),
         _pad_last(params["g_dec"], D0),
         _pad_last(params["beta_dec"], D0)], axis=0).astype(jnp.float32)
    return {"dim0": dim0, "dim1": dim1, "D0": D0, "D1": D1, "mxu_bf16": bool(mxu_bf16),
            "w_enc": w_enc, "w_dec": w_dec, "bgb_enc": bgb_enc, "bgb_dec": bgb_dec}


def auto_encode_forward(x, prep, *, fuse=None, tile_cap=2048):
    """Returns (x_reconstructed, code) exactly like Auto_Encode.forward (train-mode BN)."""
    N, dim0 = x.shape
    assert dim0 == prep["dim0"]
    dim1, D0, D1 = prep["dim1"], prep["D0"], prep["D1"]

    x_in = x.astype(prep["w_enc"].dtype) if prep["mxu_bf16"] else x
    cap, budget = _vmem_info()

    if fuse is None:
        # Fuse both stages into one pallas_call when everything (x, both weight matrices,
        # both activations) comfortably fits VMEM: removes the HBM round trip of the code
        # activation and one kernel-launch / padding pass.
        xb = x_in.dtype.itemsize
        wb = prep["w_enc"].dtype.itemsize
        n_pad = _round_up(N, SUBLANE)
        fused_need = (n_pad * _round_up(dim0, LANE) * xb
                      + prep["w_enc"].size * wb + prep["w_dec"].size * wb
                      + 4 * (n_pad * (D0 + 2 * D1) + SUBLANE * (D0 + D1)))
        fuse = 4 * fused_need <= budget

    if fuse:
        out_p, code_p = _fused_forward(
            x_in, prep["w_enc"], prep["bgb_enc"], prep["w_dec"], prep["bgb_dec"],
            vmem_limit=min(budget, int(cap * 0.9)))
    else:
        # encoder: Linear(dim0, dim1) -> Tanh -> BatchNorm1d(dim1)
        code_p = _linear_tanh_bn_tiled(x_in, prep["w_enc"], prep["bgb_enc"], tile_cap=tile_cap)
        code_in = code_p.astype(prep["w_dec"].dtype) if prep["mxu_bf16"] else code_p
        # decoder: Linear(dim1, dim0) -> Tanh -> BatchNorm1d(dim0); padded code columns are 0
        # and padded w_dec rows are 0, so the padded contraction matches the unpadded math.
        out_p = _linear_tanh_bn_tiled(code_in, prep["w_dec"], prep["bgb_dec"], tile_cap=tile_cap)

    return out_p[:, :dim0], code_p[:, :dim1]


# ----------------------------------------------------------------------------- params & reference


def init_params(key, dim0, dim1):
    """Deterministic synthetic init matching the PyTorch parameter shapes.
    nn.Linear(dim0, dim1).weight is [dim1, dim0]; we store it pre-transposed as [dim0, dim1]."""
    k1, k2, k3, k4 = jax.random.split(key, 4)
    bound_e = 1.0 / jnp.sqrt(dim0)
    bound_d = 1.0 / jnp.sqrt(dim1)
    return {
        "w_enc": jax.random.uniform(k1, (dim0, dim1), jnp.float32, -bound_e, bound_e),
        "b_enc": jax.random.uniform(k2, (1, dim1), jnp.float32, -bound_e, bound_e),
        "g_enc": jnp.ones((1, dim1), jnp.float32),       # BatchNorm1d(dim1).weight
        "beta_enc": jnp.zeros((1, dim1), jnp.float32),   # BatchNorm1d(dim1).bias
        "w_dec": jax.random.uniform(k3, (dim1, dim0), jnp.float32, -bound_d, bound_d),
        "b_dec": jax.random.uniform(k4, (1, dim0), jnp.float32, -bound_d, bound_d),
        "g_dec": jnp.ones((1, dim0), jnp.float32),
        "beta_dec": jnp.zeros((1, dim0), jnp.float32),
    }


def _reference(x, p):
    """Pure-JAX reference mirroring the PyTorch forward (training-mode BN, f32 matmuls)."""
    hp = lax.Precision.HIGHEST
    h = jnp.tanh(jnp.dot(x, p["w_enc"], precision=hp) + p["b_enc"])
    m, v = jnp.mean(h, 0, keepdims=True), jnp.var(h, 0, keepdims=True)
    y = (h - m) / jnp.sqrt(v + BN_EPS) * p["g_enc"] + p["beta_enc"]
    h2 = jnp.tanh(jnp.dot(y, p["w_dec"], precision=hp) + p["b_dec"])
    m2, v2 = jnp.mean(h2, 0, keepdims=True), jnp.var(h2, 0, keepdims=True)
    xr = (h2 - m2) / jnp.sqrt(v2 + BN_EPS) * p["g_dec"] + p["beta_dec"]
    return xr, y


if __name__ == "__main__":
    key = jax.random.PRNGKey(0)
    kx, kp, kx2, kp2 = jax.random.split(key, 4)

    # --- small shapes (typical Auto_Encode usage): auto-selects the fused single-kernel path ---
    N, dim0, dim1 = 8, 32, 16
    x = jax.random.normal(kx, (N, dim0), jnp.float32)
    params = init_params(kp, dim0, dim1)
    prep = prepare_params(params)                       # pad/pack once, not per forward
    out, code = auto_encode_forward(x, prep)
    out = jax.block_until_ready(out)
    code = jax.block_until_ready(code)
    ref_out, ref_code = _reference(x, params)
    assert out.shape == (N, dim0) and code.shape == (N, dim1)
    assert jnp.allclose(out, ref_out, atol=2e-4), "fused decoder output mismatch"
    assert jnp.allclose(code, ref_code, atol=2e-4), "fused encoder code mismatch"

    # --- larger shapes: exercise the tiled streamed-weight path (grid >= 2 parallel steps) ---
    N2, d0, d1 = 64, 300, 256
    x2 = jax.random.normal(kx2, (N2, d0), jnp.float32)
    params2 = init_params(kp2, d0, d1)
    prep2 = prepare_params(params2)
    out2, code2 = auto_encode_forward(x2, prep2, fuse=False)
    out2 = jax.block_until_ready(out2)
    code2 = jax.block_until_ready(code2)
    ref_out2, ref_code2 = _reference(x2, params2)
    assert out2.shape == (N2, d0) and code2.shape == (N2, d1)
    assert jnp.allclose(out2, ref_out2, atol=2e-4), "tiled decoder output mismatch"
    assert jnp.allclose(code2, ref_code2, atol=2e-4), "tiled encoder code mismatch"

    print("KERNEL_OK")
</pallas_src>

<mosaic_0001>
module attributes {stable_mosaic.version = 11 : i64} {
  func.func @_fused_kernel(%arg0: memref<8x32xf32, #tpu.memory_space<vmem>>, %arg1: memref<32x128xf32, #tpu.memory_space<vmem>>, %arg2: memref<3x128xf32, #tpu.memory_space<vmem>>, %arg3: memref<128x128xf32, #tpu.memory_space<vmem>>, %arg4: memref<3x128xf32, #tpu.memory_space<vmem>>, %arg5: memref<8x128xf32, #tpu.memory_space<vmem>>, %arg6: memref<8x128xf32, #tpu.memory_space<vmem>>) attributes {dimension_semantics = [], scalar_prefetch = 0 : i64, scratch_operands = 0 : i64, tpu.core_type = #tpu.core_type<tc>} {
    %c0 = arith.constant 0 : index
    %c0_0 = arith.constant 0 : index
    %0 = vector.load %arg0[%c0, %c0_0] : memref<8x32xf32, #tpu.memory_space<vmem>>, vector<8x32xf32>
    %c0_1 = arith.constant 0 : index
    %c0_2 = arith.constant 0 : index
    %1 = vector.load %arg1[%c0_1, %c0_2] : memref<32x128xf32, #tpu.memory_space<vmem>>, vector<32x128xf32>
    %c0_3 = arith.constant 0 : index
    %c0_4 = arith.constant 0 : index
    %2 = vector.load %arg2[%c0_3, %c0_4] : memref<3x128xf32, #tpu.memory_space<vmem>>, vector<3x128xf32>
    %cst = arith.constant dense<0.000000e+00> : vector<8x128xf32>
    %3 = tpu.matmul %0, %1, %cst {dimension_numbers = #tpu.dot_dimension_numbers<[1], [0], [0], [1], [0, 0, 1, 1], [], []>} : vector<8x32xf32>, vector<32x128xf32>, vector<8x128xf32> -> vector<8x128xf32>
    %4 = vector.extract_strided_slice %2 {offsets = [0, 0], sizes = [1, 128], strides = [1, 1]} : vector<3x128xf32> to vector<1x128xf32>
    %5 = vector.broadcast %4 : vector<1x128xf32> to vector<8x128xf32>
    %6 = arith.addf %3, %5 : vector<8x128xf32>
    %7 = math.tanh %6 : vector<8x128xf32>
    %cst_5 = arith.constant dense<0.000000e+00> : vector<128xf32>
    %8 = vector.multi_reduction <add>, %7, %cst_5 [0] : vector<8x128xf32> to vector<128xf32>
    %9 = vector.shape_cast %8 : vector<128xf32> to vector<1x128xf32>
    %cst_6 = arith.constant 8.000000e+00 : f32
    %10 = vector.broadcast %cst_6 : f32 to vector<1x128xf32>
    %11 = arith.divf %9, %10 : vector<1x128xf32>
    %12 = vector.broadcast %11 : vector<1x128xf32> to vector<8x128xf32>
    %13 = arith.subf %7, %12 : vector<8x128xf32>
    %14 = arith.mulf %13, %13 : vector<8x128xf32>
    %cst_7 = arith.constant dense<0.000000e+00> : vector<128xf32>
    %15 = vector.multi_reduction <add>, %14, %cst_7 [0] : vector<8x128xf32> to vector<128xf32>
    %16 = vector.shape_cast %15 : vector<128xf32> to vector<1x128xf32>
    %cst_8 = arith.constant 8.000000e+00 : f32
    %17 = vector.broadcast %cst_8 : f32 to vector<1x128xf32>
    %18 = arith.divf %16, %17 : vector<1x128xf32>
    %cst_9 = arith.constant 9.99999974E-6 : f32
    %19 = vector.broadcast %cst_9 : f32 to vector<1x128xf32>
    %20 = arith.addf %18, %19 : vector<1x128xf32>
    %21 = math.rsqrt %20 : vector<1x128xf32>
    %22 = vector.broadcast %21 : vector<1x128xf32> to vector<8x128xf32>
    %23 = arith.mulf %13, %22 : vector<8x128xf32>
    %24 = vector.extract_strided_slice %2 {offsets = [1, 0], sizes = [1, 128], strides = [1, 1]} : vector<3x128xf32> to vector<1x128xf32>
    %25 = vector.broadcast %24 : vector<1x128xf32> to vector<8x128xf32>
    %26 = arith.mulf %23, %25 : vector<8x128xf32>
    %27 = vector.extract_strided_slice %2 {offsets = [2, 0], sizes = [1, 128], strides = [1, 1]} : vector<3x128xf32> to vector<1x128xf32>
    %28 = vector.broadcast %27 : vector<1x128xf32> to vector<8x128xf32>
    %29 = arith.addf %26, %28 : vector<8x128xf32>
    %c0_10 = arith.constant 0 : index
    %c0_11 = arith.constant 0 : index
    %30 = vector.load %arg6[%c0_10, %c0_11] : memref<8x128xf32, #tpu.memory_space<vmem>>, vector<8x128xf32>
    tpu.vector_store %arg6[%c0_10, %c0_11], %29 {strides = array<i32>} : memref<8x128xf32, #tpu.memory_space<vmem>>, vector<8x128xf32>,
    %c0_12 = arith.constant 0 : index
    %c0_13 = arith.constant 0 : index
    %31 = vector.load %arg3[%c0_12, %c0_13] : memref<128x128xf32, #tpu.memory_space<vmem>>, vector<128x128xf32>
    %c0_14 = arith.constant 0 : index
    %c0_15 = arith.constant 0 : index
    %32 = vector.load %arg4[%c0_14, %c0_15] : memref<3x128xf32, #tpu.memory_space<vmem>>, vector<3x128xf32>
    %cst_16 = arith.constant dense<0.000000e+00> : vector<8x128xf32>
    %33 = tpu.matmul %29, %31, %cst_16 {dimension_numbers = #tpu.dot_dimension_numbers<[1], [0], [0], [1], [0, 0, 1, 1], [], []>} : vector<8x128xf32>, vector<128x128xf32>, vector<8x128xf32> -> vector<8x128xf32>
    %34 = vector.extract_strided_slice %32 {offsets = [0, 0], sizes = [1, 128], strides = [1, 1]} : vector<3x128xf32> to vector<1x128xf32>
    %35 = vector.broadcast %34 : vector<1x128xf32> to vector<8x128xf32>
    %36 = arith.addf %33, %35 : vector<8x128xf32>
    %37 = math.tanh %36 : vector<8x128xf32>
    %cst_17 = arith.constant dense<0.000000e+00> : vector<128xf32>
    %38 = vector.multi_reduction <add>, %37, %cst_17 [0] : vector<8x128xf32> to vector<128xf32>
    %39 = vector.shape_cast %38 : vector<128xf32> to vector<1x128xf32>
    %cst_18 = arith.constant 8.000000e+00 : f32
    %40 = vector.broadcast %cst_18 : f32 to vector<1x128xf32>
    %41 = arith.divf %39, %40 : vector<1x128xf32>
    %42 = vector.broadcast %41 : vector<1x128xf32> to vector<8x128xf32>
    %43 = arith.subf %37, %42 : vector<8x128xf32>
    %44 = arith.mulf %43, %43 : vector<8x128xf32>
    %cst_19 = arith.constant dense<0.000000e+00> : vector<128xf32>
    %45 = vector.multi_reduction <add>, %44, %cst_19 [0] : vector<8x128xf32> to vector<128xf32>
    %46 = vector.shape_cast %45 : vector<128xf32> to vector<1x128xf32>
    %cst_20 = arith.constant 8.000000e+00 : f32
    %47 = vector.broadcast %cst_20 : f32 to vector<1x128xf32>
    %48 = arith.divf %46, %47 : vector<1x128xf32>
    %cst_21 = arith.constant 9.99999974E-6 : f32
    %49 = vector.broadcast %cst_21 : f32 to vector<1x128xf32>
    %50 = arith.addf %48, %49 : vector<1x128xf32>
    %51 = math.rsqrt %50 : vector<1x128xf32>
    %52 = vector.broadcast %51 : vector<1x128xf32> to vector<8x128xf32>
    %53 = arith.mulf %43, %52 : vector<8x128xf32>
    %54 = vector.extract_strided_slice %32 {offsets = [1, 0], sizes = [1, 128], strides = [1, 1]} : vector<3x128xf32> to vector<1x128xf32>
    %55 = vector.broadcast %54 : vector<1x128xf32> to vector<8x128xf32>
    %56 = arith.mulf %53, %55 : vector<8x128xf32>
    %57 = vector.extract_strided_slice %32 {offsets = [2, 0], sizes = [1, 128], strides = [1, 1]} : vector<3x128xf32> to vector<1x128xf32>
    %58 = vector.broadcast %57 : vector<1x128xf32> to vector<8x128xf32>
    %59 = arith.addf %56, %58 : vector<8x128xf32>
    %c0_22 = arith.constant 0 : index
    %c0_23 = arith.constant 0 : index
    %60 = vector.load %arg5[%c0_22, %c0_23] : memref<8x128xf32, #tpu.memory_space<vmem>>, vector<8x128xf32>
    tpu.vector_store %arg5[%c0_22, %c0_23], %59 {strides = array<i32>} : memref<8x128xf32, #tpu.memory_space<vmem>>, vector<8x128xf32>,
    return
  }
}

</mosaic_0001>

<llo_original>
// kernel: tpu_custom_call.1
$region0: #{tpu_custom_call.1}
  #allocation0 [shape = 'u32[]', space=smem, size = 0x4, offset = 0x4, fixed_abs, tag = 'smem constant byte address 0x4 - core index']
  #allocation1 [shape = 'u32[144,128]{1,0:T(1,128)}', space=vmem, size = 0x12000, scoped, tag = 'internal scratch']
  %s0 = inlined_call_operand.hbm [shape: f32[8,32], index: 0, kind: input, shape index: {}]
  %s1 = inlined_call_operand.hbm [shape: f32[32,128], index: 1, kind: input, shape index: {}]
  %s2 = inlined_call_operand.vmem [shape: f32[3,128], index: 2, kind: input, shape index: {}]
  %s3 = inlined_call_operand.hbm [shape: f32[128,128], index: 3, kind: input, shape index: {}]
  %s4 = inlined_call_operand.vmem [shape: f32[3,128], index: 4, kind: input, shape index: {}]
  %s5 = inlined_call_operand.hbm [shape: f32[8,128], index: 5, kind: output, shape index: {0}]
  %s6 = inlined_call_operand.hbm [shape: f32[8,128], index: 6, kind: output, shape index: {1}]
  %7 = xla_tuple %s5, %s6
  %s8 = sld [smem:[#allocation0]]
  $region50: #{tpu_custom_call.1} parent=0
    _
  %s10 = ssub.s32 1, %s8
  %s11 = scalar_select 0, %s10, %s8
  $region1: #{tpu_custom_call.1} parent=0
    #allocation2 [shape = 'u8[4096]{0}', space=vmem, size = 0x1000, scoped, tag = 'input window, operand 0, single buffered']
    #allocation3 [shape = 's32[1]{0}', space=sflag, size = 0x4, scoped, tag = 'scoped memory for tpu_custom_call.1']
    #allocation4 [shape = 's32[1]{0}', space=sflag, size = 0x4, scoped, tag = 'scoped memory for tpu_custom_call.1']
    #allocation5 [shape = 'u8[16384]{0}', space=vmem, size = 0x4000, scoped, tag = 'input window, operand 1, single buffered']
    #allocation6 [shape = 's32[1]{0}', space=sflag, size = 0x4, scoped, tag = 'scoped memory for tpu_custom_call.1']
    #allocation7 [shape = 'u8[65536]{0}', space=vmem, size = 0x10000, scoped, tag = 'input window, operand 3, single buffered']
    #allocation8 [shape = 'u8[4096]{0}', space=vmem, size = 0x1000, scoped, tag = 'output window, operand 0, single buffered']
    #allocation9 [shape = 'u8[4096]{0}', space=vmem, size = 0x1000, scoped, tag = 'output window, operand 1, single buffered']
    #allocation10 [shape = 's32[1]{0}', space=sflag, size = 0x4, scoped, tag = 'scoped memory for tpu_custom_call.1']
    %12 = vsyncpa [#allocation3], 0
    %13 = vsyncpa [#allocation6], 0
    %14 = vsyncpa [#allocation4], 0
    %15 = vsyncpa [#allocation10], 0
    // Predicated region
    $region2: #{tpu_custom_call.1} parent=1 // pred_check
      _
    $region3: #{tpu_custom_call.1} parent=1 // pred_check_branch
      %17 = sbr.rel (0) target = $region5
    $region4: #{tpu_custom_call.1} parent=1 // pred_region
      %s19 = ssub.s32 128, 128
      %20 = vsyncadd [#allocation3], %s19
      %s22 = sshll.u32 [#allocation2], 4
      %s23 = int_to_ptr.vmem [resolvable:$true] %s22
      %25 = dma.hbm_to_vmem [thread:$0]  %s0, 128, %s23, [#allocation3]
    $region5: #{tpu_custom_call.1} parent=1 // pred_fallthru
      _
    // Predicated region
    $region6: #{tpu_custom_call.1} parent=1 // pred_check
      _
    $region7: #{tpu_custom_call.1} parent=1 // pred_check_branch
      %27 = sbr.rel (0) target = $region9
    $region8: #{tpu_custom_call.1} parent=1 // pred_region
      %s29 = ssub.s32 512, 512
      %30 = vsyncadd [#allocation6], %s29
      %s31 = sshll.u32 [#allocation5], 4
      %s32 = int_to_ptr.vmem [resolvable:$true] %s31
      %37 = dma.hbm_to_vmem [thread:$0]  %s1, 512, %s32, [#allocation6], 128, 128, 8
    $region9: #{tpu_custom_call.1} parent=1 // pred_fallthru
      _
    // Predicated region
    $region10: #{tpu_custom_call.1} parent=1 // pred_check
      _
    $region11: #{tpu_custom_call.1} parent=1 // pred_check_branch
      %39 = sbr.rel (0) target = $region13
    $region12: #{tpu_custom_call.1} parent=1 // pred_region
      _
    $region13: #{tpu_custom_call.1} parent=1 // pred_fallthru
      _
    // Predicated region
    $region14: #{tpu_custom_call.1} parent=1 // pred_check
      _
    $region15: #{tpu_custom_call.1} parent=1 // pred_check_branch
      %41 = sbr.rel (0) target = $region17
    $region16: #{tpu_custom_call.1} parent=1 // pred_region
      %s43 = ssub.s32 2048, 2048
      %44 = vsyncadd [#allocation6], %s43
      %s45 = sshll.u32 [#allocation7], 4
      %s46 = int_to_ptr.vmem [resolvable:$true] %s45
      %51 = dma.hbm_to_vmem [thread:$0]  %s3, 2048, %s46, [#allocation6], 128, 128, 8
    $region17: #{tpu_custom_call.1} parent=1 // pred_fallthru
      _
    // Predicated region
    $region18: #{tpu_custom_call.1} parent=1 // pred_check
      _
    $region19: #{tpu_custom_call.1} parent=1 // pred_check_branch
      %53 = sbr.rel (0) target = $region21
    $region20: #{tpu_custom_call.1} parent=1 // pred_region
      _
    $region21: #{tpu_custom_call.1} parent=1 // pred_fallthru
      _
    // Predicated region
    $region22: #{tpu_custom_call.1} parent=1 // pred_check
      _
    $region23: #{tpu_custom_call.1} parent=1 // pred_check_branch
      %55 = sbr.rel (0) target = $region25
    $region24: #{tpu_custom_call.1} parent=1 // pred_region
      %56 = dma.done [#allocation3], 128
    $region25: #{tpu_custom_call.1} parent=1 // pred_fallthru
      _
    // Predicated region
    $region26: #{tpu_custom_call.1} parent=1 // pred_check
      _
    $region27: #{tpu_custom_call.1} parent=1 // pred_check_branch
      %58 = sbr.rel (0) target = $region29
    $region28: #{tpu_custom_call.1} parent=1 // pred_region
      %59 = dma.done [#allocation6], 512
    $region29: #{tpu_custom_call.1} parent=1 // pred_fallthru
      _
    // Predicated region
    $region30: #{tpu_custom_call.1} parent=1 // pred_check
      _
    $region31: #{tpu_custom_call.1} parent=1 // pred_check_branch
      %61 = sbr.rel (0) target = $region33
    $region32: #{tpu_custom_call.1} parent=1 // pred_region
      %62 = dma.done [#allocation6], 2048
    $region33: #{tpu_custom_call.1} parent=1 // pred_fallthru
      _
    %v63 = vld [vmem:[#allocation2] sm:$0xff]
    %v64 = vld [vmem:[#allocation5] sm:$0xff]
    %v65 = vld [vmem:[#allocation5 + $0x8] sm:$0xff]
    %v66 = vld [vmem:[#allocation5 + $0x10] sm:$0xff]
    %v67 = vld [vmem:[#allocation5 + $0x18] sm:$0xff]
    %v68 = vld [vmem:[%s2] sm:$0x7]
    %v69 = vlaneseq
    %v70 = vshrl.u32 %v69, 7
    %v71 = vsub.s32 0, %v70
    %v72 = vrot.slane %v68, %v71
    %vm73 = vcmask 261120
    %v75 = vsel %vm73, %v63, 0
    %77 = vmatprep.subr.mxu0 0.0
    %78 = vmatpush1.msra.mxu0 %v64
    %79 = vmatprep.subr.mxu0 0.0
    %80 = vmatpush1.msra.mxu0 %v65
    %81 = vmatprep.subr.mxu0 0.0
    %82 = vmatpush1.msra.mxu0 %v66
    %83 = vmatprep.subr.mxu0 0.0
    %84 = vmatpush1.msra.mxu0 %v67
    %85 = vmatprep.subr.mxu0 0.0
    %86 = vmatpush1.msra.mxu0 0.0
    %87 = vmatprep.subr.mxu0 0.0
    %88 = vmatpush1.msra.mxu0 0.0
    %89 = vmatprep.subr.mxu0 0.0
    %90 = vmatpush1.msra.mxu0 0.0
    %91 = vmatprep.subr.mxu0 0.0
    %92 = vmatpush1.msra.mxu0 0.0
    %93 = vmatprep.subr.mxu0 0.0
    %94 = vmatpush1.msra.mxu0 0.0
    %95 = vmatprep.subr.mxu0 0.0
    %96 = vmatpush1.msra.mxu0 0.0
    %97 = vmatprep.subr.mxu0 0.0
    %98 = vmatpush1.msra.mxu0 0.0
    %99 = vmatprep.subr.mxu0 0.0
    %100 = vmatpush1.msra.mxu0 0.0
    %101 = vmatprep.subr.mxu0 0.0
    %102 = vmatpush1.msra.mxu0 0.0
    %103 = vmatprep.subr.mxu0 0.0
    %104 = vmatpush1.msra.mxu0 0.0
    %105 = vmatprep.subr.mxu0 0.0
    %106 = vmatpush1.msra.mxu0 0.0
    %107 = vmatprep.subr.mxu0 0.0
    %108 = vmatpush1.msra.mxu0 0.0
    %109 = vmatprep.subr.mxu0 0.0
    %110 = vmatpush1.msra.mxu0 0.0
    %111 = vmatprep.subr.mxu0 0.0
    %112 = vmatpush1.msra.mxu0 0.0
    %113 = vmatprep.subr.mxu0 0.0
    %114 = vmatpush1.msra.mxu0 0.0
    %115 = vmatprep.subr.mxu0 0.0
    %116 = vmatpush1.msra.mxu0 0.0
    %117 = vmatprep.subr.mxu0 0.0
    %118 = vmatpush1.msra.mxu0 0.0
    %119 = vmatprep.subr.mxu0 0.0
    %120 = vmatpush1.msra.mxu0 0.0
    %121 = vmatprep.subr.mxu0 0.0
    %122 = vmatpush1.msra.mxu0 0.0
    %123 = vmatprep.subr.mxu0 0.0
    %124 = vmatpush1.msra.mxu0 0.0
    %125 = vmatprep.subr.mxu0 0.0
    %126 = vmatpush1.msra.mxu0 0.0
    %127 = vmatprep.subr.mxu0 0.0
    %128 = vmatpush1.msra.mxu0 0.0
    %129 = vmatprep.subr.mxu0 0.0
    %130 = vmatpush1.msra.mxu0 0.0
    %131 = vmatprep.subr.mxu0 0.0
    %132 = vmatpush1.msra.mxu0 0.0
    %133 = vmatprep.subr.mxu0 0.0
    %134 = vmatpush1.msra.mxu0 0.0
    %135 = vmatprep.subr.mxu0 0.0
    %136 = vmatpush1.msra.mxu0 0.0
    %137 = vmatprep.subr.mxu0 0.0
    %138 = vmatpush1.msra.mxu0 0.0
    %139 = vmatprep.subr.mxu0 0.0
    %140 = vmatpush1.msra.mxu0 0.0
    %141 = vmatprep.mubr.f32.mxu0 0.0
    %142 = vmatmul.mubr.f32.gmra.mrb[0].mxu0 %v75
    %v143 = vpop.f32.mrb[0].mxu0
    %v144 = vadd.f32 %v72, %v143
    %v145 = vpop.f32.mrb[0].mxu0
    %146 = vdwg.mxu0
    %v147 = vtanh.pop %v144
    %v148 = vrot.slane %v147, 4
    %v149 = vadd.f32 %v147, %v148
    %v150 = vrot.slane %v149, 2
    %v151 = vadd.f32 %v149, %v150
    %v152 = vrot.slane %v151, 1
    %v153 = vadd.f32 %v151, %v152
    %v154 = vrcp.pop 8.0
    %v155 = vmul.f32 %v153, %v154
    %v156 = vsub.f32 %v147, %v155
    %v157 = vmul.f32 %v156, %v156
    %v158 = vrot.slane %v157, 4
    %v159 = vadd.f32 %v157, %v158
    %v160 = vrot.slane %v159, 2
    %v161 = vadd.f32 %v159, %v160
    %v162 = vrot.slane %v161, 1
    %v163 = vadd.f32 %v161, %v162
    %v164 = vmul.f32 %v163, %v154
    %v165 = vadd.f32 %v164, 1e-05
    %v166 = vrsqrt.pop %v165
    %v167 = vmul.f32 %v156, %v166
    %v168 = vlaneseq
    %v169 = vshrl.u32 %v168, 7
    %v170 = vsub.s32 1, %v169
    %v171 = vrot.slane %v68, %v170
    %v172 = vmul.f32 %v167, %v171
    %v173 = vlaneseq
    %v174 = vshrl.u32 %v173, 7
    %v175 = vsub.s32 2, %v174
    %v176 = vrot.slane %v68, %v175
    %v177 = vadd.f32 %v172, %v176
    %178 = vst [vmem:[#allocation9] sm:$0xff] %v177
    %v179 = vld [vmem:[#allocation7] sm:$0xff]
    %v180 = vld [vmem:[#allocation7 + $0x8] sm:$0xff]
    %v181 = vld [vmem:[#allocation7 + $0x10] sm:$0xff]
    %v182 = vld [vmem:[#allocation7 + $0x18] sm:$0xff]
    %v183 = vld [vmem:[#allocation7 + $0x20] sm:$0xff]
    %v184 = vld [vmem:[#allocation7 + $0x28] sm:$0xff]
    %v185 = vld [vmem:[#allocation7 + $0x30] sm:$0xff]
    %v186 = vld [vmem:[#allocation7 + $0x38] sm:$0xff]
    %v187 = vld [vmem:[#allocation7 + $0x40] sm:$0xff]
    %v188 = vld [vmem:[#allocation7 + $0x48] sm:$0xff]
    %v189 = vld [vmem:[#allocation7 + $0x50] sm:$0xff]
    %v190 = vld [vmem:[#allocation7 + $0x58] sm:$0xff]
    %v191 = vld [vmem:[#allocation7 + $0x60] sm:$0xff]
    %v192 = vld [vmem:[#allocation7 + $0x68] sm:$0xff]
    %v193 = vld [vmem:[#allocation7 + $0x70] sm:$0xff]
    %v194 = vld [vmem:[#allocation7 + $0x78] sm:$0xff]
    %v195 = vld [vmem:[%s4] sm:$0x7]
    %v196 = vlaneseq
    %v197 = vshrl.u32 %v196, 7
    %v198 = vsub.s32 0, %v197
    %v199 = vrot.slane %v195, %v198
    %200 = vmatprep.subr.mxu0 0.0
    %201 = vmatpush1.msra.mxu0 %v179
    %202 = vmatprep.subr.mxu0 0.0
    %203 = vmatpush1.msra.mxu0 %v180
    %204 = vmatprep.subr.mxu0 0.0
    %205 = vmatpush1.msra.mxu0 %v181
    %206 = vmatprep.subr.mxu0 0.0
    %207 = vmatpush1.msra.mxu0 %v182
    %208 = vmatprep.subr.mxu0 0.0
    %209 = vmatpush1.msra.mxu0 %v183
    %210 = vmatprep.subr.mxu0 0.0
    %211 = vmatpush1.msra.mxu0 %v184
    %212 = vmatprep.subr.mxu0 0.0
    %213 = vmatpush1.msra.mxu0 %v185
    %214 = vmatprep.subr.mxu0 0.0
    %215 = vmatpush1.msra.mxu0 %v186
    %216 = vmatprep.subr.mxu0 0.0
    %217 = vmatpush1.msra.mxu0 %v187
    %218 = vmatprep.subr.mxu0 0.0
    %219 = vmatpush1.msra.mxu0 %v188
    %220 = vmatprep.subr.mxu0 0.0
    %221 = vmatpush1.msra.mxu0 %v189
    %222 = vmatprep.subr.mxu0 0.0
    %223 = vmatpush1.msra.mxu0 %v190
    %224 = vmatprep.subr.mxu0 0.0
    %225 = vmatpush1.msra.mxu0 %v191
    %226 = vmatprep.subr.mxu0 0.0
    %227 = vmatpush1.msra.mxu0 %v192
    %228 = vmatprep.subr.mxu0 0.0
    %229 = vmatpush1.msra.mxu0 %v193
    %230 = vmatprep.subr.mxu0 0.0
    %231 = vmatpush1.msra.mxu0 %v194
    %232 = vmatprep.subr.mxu0 0.0
    %233 = vmatpush1.msra.mxu0 0.0
    %234 = vmatprep.subr.mxu0 0.0
    %235 = vmatpush1.msra.mxu0 0.0
    %236 = vmatprep.subr.mxu0 0.0
    %237 = vmatpush1.msra.mxu0 0.0
    %238 = vmatprep.subr.mxu0 0.0
    %239 = vmatpush1.msra.mxu0 0.0
    %240 = vmatprep.subr.mxu0 0.0
    %241 = vmatpush1.msra.mxu0 0.0
    %242 = vmatprep.subr.mxu0 0.0
    %243 = vmatpush1.msra.mxu0 0.0
    %244 = vmatprep.subr.mxu0 0.0
    %245 = vmatpush1.msra.mxu0 0.0
    %246 = vmatprep.subr.mxu0 0.0
    %247 = vmatpush1.msra.mxu0 0.0
    %248 = vmatprep.subr.mxu0 0.0
    %249 = vmatpush1.msra.mxu0 0.0
    %250 = vmatprep.subr.mxu0 0.0
    %251 = vmatpush1.msra.mxu0 0.0
    %252 = vmatprep.subr.mxu0 0.0
    %253 = vmatpush1.msra.mxu0 0.0
    %254 = vmatprep.subr.mxu0 0.0
    %255 = vmatpush1.msra.mxu0 0.0
    %256 = vmatprep.subr.mxu0 0.0
    %257 = vmatpush1.msra.mxu0 0.0
    %258 = vmatprep.subr.mxu0 0.0
    %259 = vmatpush1.msra.mxu0 0.0
    %260 = vmatprep.subr.mxu0 0.0
    %261 = vmatpush1.msra.mxu0 0.0
    %262 = vmatprep.subr.mxu0 0.0
    %263 = vmatpush1.msra.mxu0 0.0
    %264 = vmatprep.mubr.f32.mxu0 0.0
    %265 = vmatmul.mubr.f32.gmra.mrb[0].mxu0 %v177
    %v266 = vpop.f32.mrb[0].mxu0
    %v267 = vadd.f32 %v199, %v266
    %v268 = vpop.f32.mrb[0].mxu0
    %269 = vdwg.mxu0
    %v270 = vtanh.pop %v267
    %v271 = vrot.slane %v270, 4
    %v272 = vadd.f32 %v270, %v271
    %v273 = vrot.slane %v272, 2
    %v274 = vadd.f32 %v272, %v273
    %v275 = vrot.slane %v274, 1
    %v276 = vadd.f32 %v274, %v275
    %v277 = vmul.f32 %v276, %v154
    %v278 = vsub.f32 %v270, %v277
    %v279 = vmul.f32 %v278, %v278
    %v280 = vrot.slane %v279, 4
    %v281 = vadd.f32 %v279, %v280
    %v282 = vrot.slane %v281, 2
    %v283 = vadd.f32 %v281, %v282
    %v284 = vrot.slane %v283, 1
    %v285 = vadd.f32 %v283, %v284
    %v286 = vmul.f32 %v285, %v154
    %v287 = vadd.f32 %v286, 1e-05
    %v288 = vrsqrt.pop %v287
    %v289 = vmul.f32 %v278, %v288
    %v290 = vlaneseq
    %v291 = vshrl.u32 %v290, 7
    %v292 = vsub.s32 1, %v291
    %v293 = vrot.slane %v195, %v292
    %v294 = vmul.f32 %v289, %v293
    %v295 = vlaneseq
    %v296 = vshrl.u32 %v295, 7
    %v297 = vsub.s32 2, %v296
    %v298 = vrot.slane %v195, %v297
    %v299 = vadd.f32 %v294, %v298
    %300 = vst [vmem:[#allocation8] sm:$0xff] %v299
    // Predicated region
    $region34: #{tpu_custom_call.1} parent=1 // pred_check
      _
    $region35: #{tpu_custom_call.1} parent=1 // pred_check_branch
      %302 = sbr.rel (0) target = $region37
    $region36: #{tpu_custom_call.1} parent=1 // pred_region
      %s304 = ssub.s32 128, 128
      %305 = vsyncadd [#allocation4], %s304
      %s307 = sshll.u32 [#allocation8], 4
      %s308 = int_to_ptr.vmem [resolvable:$true] %s307
      %310 = dma.vmem_to_hbm [thread:$0]  %s308, 128, %s5, [#allocation4]
    $region37: #{tpu_custom_call.1} parent=1 // pred_fallthru
      _
    // Predicated region
    $region38: #{tpu_custom_call.1} parent=1 // pred_check
      _
    $region39: #{tpu_custom_call.1} parent=1 // pred_check_branch
      %312 = sbr.rel (0) target = $region41
    $region40: #{tpu_custom_call.1} parent=1 // pred_region
      %s314 = ssub.s32 128, 128
      %315 = vsyncadd [#allocation10], %s314
      %s317 = sshll.u32 [#allocation9], 4
      %s318 = int_to_ptr.vmem [resolvable:$true] %s317
      %320 = dma.vmem_to_hbm [thread:$0]  %s318, 128, %s6, [#allocation10]
    $region41: #{tpu_custom_call.1} parent=1 // pred_fallthru
      _
    // Predicated region
    $region42: #{tpu_custom_call.1} parent=1 // pred_check
      _
    $region43: #{tpu_custom_call.1} parent=1 // pred_check_branch
      %322 = sbr.rel (0) target = $region45
    $region44: #{tpu_custom_call.1} parent=1 // pred_region
      %323 = dma.done [#allocation4], 128
    $region45: #{tpu_custom_call.1} parent=1 // pred_fallthru
      _
    // Predicated region
    $region46: #{tpu_custom_call.1} parent=1 // pred_check
      _
    $region47: #{tpu_custom_call.1} parent=1 // pred_check_branch
      %325 = sbr.rel (0) target = $region49
    $region48: #{tpu_custom_call.1} parent=1 // pred_region
      %326 = dma.done [#allocation10], 128
    $region49: #{tpu_custom_call.1} parent=1 // pred_fallthru
      _
    %327 = vsyncpa [#allocation3], 1
    %328 = vsyncpa [#allocation6], 1
    %329 = vsyncpa [#allocation4], 1
    %330 = vsyncpa [#allocation10], 1

</llo_original>
